<compile_context>
chip_gen: v7x
topology: tpu7x:2x2x1
jax: 0.10.0
libtpu: 0.0.40
codegen_flags: <defaults>
</compile_context>

<pallas_src>
import jax
import jax.numpy as jnp
from jax.experimental import pallas as pl
from jax.experimental.pallas import tpu as pltpu


# ----------------------------------------------------------------------------
# Visual encoder stand-in + vis_fc (Linear + ReLU) + feature concatenation,
# tiled & pipelined over N = B*T.
# TODO(synk): the real ResNetEncoder is a pretrained ResNet50 backbone with no clean
# in-script Pallas equivalent; it is stood in by global-average-pool (folded into an
# MXU matmul) + linear projection to the encoder feature dim, followed by the faithful
# vis_fc Linear+ReLU.  At real encoder scale (K = C*HW large) add a trailing
# "arbitrary" K grid axis with a VMEM f32 accumulator (pl.when init/finalize);
# tk=512 bf16 on v6e/v7x, tk=128-256 on v5e.
# ----------------------------------------------------------------------------
def _vis_kernel(frames_ref, w1_ref, b_enc_ref, w_fc_ref, b_fc_ref,
                sens_ref, inst_ref, out_ref):
    # frames_ref: (tile_n, C*HW) bf16.  Pooling is folded into w1, so this is a
    # single lane-dense MXU matmul instead of an XLU reduction + K=C matmul.
    feat = jnp.dot(frames_ref[...], w1_ref[...],
                   preferred_element_type=jnp.float32) + b_enc_ref[...]      # (tile_n, D_enc)
    vis = jnp.dot(feat.astype(jnp.bfloat16), w_fc_ref[...],
                  preferred_element_type=jnp.float32) + b_fc_ref[...]        # (tile_n, dframe)
    vis = jnp.maximum(vis, 0.0)                                              # nn.ReLU(True)

    # Emit the already-concatenated LSTM input block, padded to 128 lanes:
    # [ vis | sensory | instructions | zeros ] -> one lane-dense store per tile,
    # and no XLA-level concatenate / HBM round trip between the two kernels.
    pieces = [vis, sens_ref[...], inst_ref[...]]
    pad_w = out_ref.shape[-1] - sum(p.shape[-1] for p in pieces)
    if pad_w:
        pieces.append(jnp.zeros((vis.shape[0], pad_w), jnp.float32))
    out_ref[...] = jnp.concatenate(pieces, axis=1)


def _pick_tile_n(N, want=16):
    # Prefer a multiple of 16 rows (bf16 packs 16 rows per sublane group), but keep
    # the grid length >= 2 so the "parallel" axis can feed both TensorCores on v7x.
    if N >= 16 and N % 16 == 0:
        t = min(want, N)
        if N // t < 2:
            t = N // 2
        return max(8, (t // 8) * 8)
    return N  # tiny N: single full-array block (satisfies the (8,128) rule trivially)


def vis_and_concat_features(frames, sensory, instructions,
                            w_enc, b_enc, w_fc, b_fc, d_in_padded):
    B, T, C, H, W = frames.shape
    N = B * T
    HW = H * W
    D_enc = w_enc.shape[1]
    dframe = w_fc.shape[1]
    dsens = sensory.shape[-1]
    dinst = instructions.shape[-1]

    # bf16 frames halve HBM->VMEM DMA on the memory-bound frame path; accumulation
    # stays f32 inside the kernel.
    frames2d = frames.reshape(N, C * HW).astype(jnp.bfloat16)
    sens2d = sensory.reshape(N, dsens).astype(jnp.float32)
    inst2d = instructions.reshape(N, dinst).astype(jnp.float32)

    # Pooling folded into the encoder weight: W1[c*HW + hw, :] = w_enc[c, :] / HW,
    # so frames2d @ W1 == mean_over_HW(frames) @ w_enc.  (Parameter transform; done once.)
    w1 = (jnp.repeat(w_enc.astype(jnp.float32), HW, axis=0) / HW).astype(jnp.bfloat16)

    tile_n = _pick_tile_n(N)
    grid = ((N + tile_n - 1) // tile_n,)

    out = pl.pallas_call(
        _vis_kernel,
        out_shape=jax.ShapeDtypeStruct((N, d_in_padded), jnp.float32),
        grid=grid,
        in_specs=[
            pl.BlockSpec((tile_n, C * HW), lambda i: (i, 0)),
            pl.BlockSpec((C * HW, D_enc), lambda i: (0, 0)),
            pl.BlockSpec((1, D_enc), lambda i: (0, 0)),
            pl.BlockSpec((D_enc, dframe), lambda i: (0, 0)),
            pl.BlockSpec((1, dframe), lambda i: (0, 0)),
            pl.BlockSpec((tile_n, dsens), lambda i: (i, 0)),
            pl.BlockSpec((tile_n, dinst), lambda i: (i, 0)),
        ],
        out_specs=pl.BlockSpec((tile_n, d_in_padded), lambda i: (i, 0)),
        compiler_params=pltpu.CompilerParams(
            dimension_semantics=("parallel",),          # shards N across both TCs on v7x
            vmem_limit_bytes=48 * 1024 * 1024),         # fits v7x 64 MiB; raise ~96-112 MiB on v5e/v6e
    )(frames2d, w1,
      b_enc.reshape(1, -1).astype(jnp.float32),
      w_fc.astype(jnp.bfloat16),
      b_fc.reshape(1, -1).astype(jnp.float32),
      sens2d, inst2d)
    return out   # (B*T, d_in_padded), rows ordered b*T + t


# ----------------------------------------------------------------------------
# LSTMRegressor: single-layer LSTM over time + output Linear(HP -> 16) + fused
# head nonlinearity cat(sigmoid(out[..., :10]), out[..., 10:]).
# One grid step per batch element ("parallel" -> megacore on v7x); the recurrence is
# unrolled in-kernel (T small & static).  Dropout is a no-op (single layer / eval);
# num_layers=1 is implemented.
# Caller contract (documented, see lstm_regressor): weights are (D, 4H)-shaped
# (i.e. torch weight_ih_l0.T / weight_hh_l0.T), bias is b_ih + b_hh pre-summed,
# gate order is torch's i, f, g, o.
# ----------------------------------------------------------------------------
def _lstm_kernel(x_ref, h0_ref, c0_ref, w_ih_ref, w_hh_ref, b_ref,
                 w_out_ref, b_out_ref, out_ref, hT_ref, cT_ref):
    T = x_ref.shape[0]
    HP = h0_ref.shape[-1]                 # hidden padded to a multiple of 128 lanes

    # Hoisted input projection: ONE MXU matmul covers every timestep (previously this
    # was folded into T serialized per-step matmuls behind a per-step concat).
    gx = jnp.dot(x_ref[...].astype(jnp.bfloat16), w_ih_ref[...],
                 preferred_element_type=jnp.float32) + b_ref[...]           # (T, 4*HP)

    w_hh = w_hh_ref[...]                  # (HP, 4*HP) bf16, resident for the whole sequence
    h = h0_ref[0]                         # (1, HP) f32
    c = c0_ref[0]                         # (1, HP) f32

    hs = []
    for t in range(T):                    # fully unrolled: no per-step grid/DMA overhead
        # Only the K=HP recurrent matmul sits on the serial dependency chain.
        gates = gx[t:t + 1, :] + jnp.dot(h.astype(jnp.bfloat16), w_hh,
                                         preferred_element_type=jnp.float32)  # (1, 4*HP)
        # HP is a multiple of 128 -> each gate block is whole 128-lane vregs
        # (no cross-lane shuffles on the recurrent critical path).
        i = jax.nn.sigmoid(gates[:, 0 * HP:1 * HP])
        f = jax.nn.sigmoid(gates[:, 1 * HP:2 * HP])
        g = jnp.tanh(      gates[:, 2 * HP:3 * HP])
        o = jax.nn.sigmoid(gates[:, 3 * HP:4 * HP])
        c = f * c + i * g
        h = o * jnp.tanh(c)
        hs.append(h)

    # Batched output projection: one (T, HP) @ (HP, D_out) matmul after the loop
    # instead of T tiny matmuls + lane-offset packing.
    h_all = jnp.concatenate(hs, axis=0)                                       # (T, HP)
    out = jnp.dot(h_all.astype(jnp.bfloat16), w_out_ref[...],
                  preferred_element_type=jnp.float32) + b_out_ref[...]        # (T, D_out)

    # Fused head nonlinearity: sigmoid on the first 10 action dims, applied once.
    col = jax.lax.broadcasted_iota(jnp.int32, out.shape, 1)
    out_ref[0] = jnp.where(col < 10, jax.nn.sigmoid(out), out)
    hT_ref[0] = h
    cT_ref[0] = c


def lstm_regressor(feat_slab, B, T, h0, c0, w_ih, w_hh, b, w_out, b_out):
    """feat_slab: (B*T, DP) already column-padded LSTM input, rows ordered b*T + t.

    Expected parameter layout (convert from torch before calling):
      w_ih = weight_ih_l0.T  -> (D_in, 4H)     w_hh = weight_hh_l0.T -> (H, 4H)
      b    = bias_ih_l0 + bias_hh_l0 -> (4H,)  gate order i, f, g, o.
    """
    DP = feat_slab.shape[-1]
    H = w_hh.shape[0]
    D_out = w_out.shape[1]
    assert w_ih.shape[1] == 4 * H and w_hh.shape == (H, 4 * H) and b.shape == (4 * H,)
    HP = ((H + 127) // 128) * 128         # pad hidden so each gate is 128-lane aligned

    # --- one-time parameter padding (wrapper side) -------------------------------
    def pad_gates(wm, rows_to):           # (rows, 4H) -> (rows_to, 4HP), gate blocks aligned
        r = wm.shape[0]
        w4 = wm.astype(jnp.float32).reshape(r, 4, H)
        w4 = jnp.pad(w4, ((0, rows_to - r), (0, 0), (0, HP - H)))
        return w4.reshape(rows_to, 4 * HP)

    w_ih_p = pad_gates(w_ih, DP).astype(jnp.bfloat16)                        # (DP, 4HP)
    w_hh_p = pad_gates(w_hh, HP).astype(jnp.bfloat16)                        # (HP, 4HP)
    b_p = jnp.pad(b.astype(jnp.float32).reshape(4, H),
                  ((0, 0), (0, HP - H))).reshape(1, 4 * HP)                  # (1, 4HP)
    w_out_p = jnp.pad(w_out.astype(jnp.float32),
                      ((0, HP - H), (0, 0))).astype(jnp.bfloat16)            # (HP, D_out)
    h0_p = jnp.pad(h0.astype(jnp.float32), ((0, 0), (0, HP - H))).reshape(B, 1, HP)
    c0_p = jnp.pad(c0.astype(jnp.float32), ((0, 0), (0, HP - H))).reshape(B, 1, HP)
    # Padded hidden lanes have zero weights/bias and zero initial c, so they stay
    # exactly zero through the recurrence and do not perturb the real lanes.

    out, hT, cT = pl.pallas_call(
        _lstm_kernel,
        out_shape=(jax.ShapeDtypeStruct((B, T, D_out), jnp.float32),
                   jax.ShapeDtypeStruct((B, 1, HP), jnp.float32),
                   jax.ShapeDtypeStruct((B, 1, HP), jnp.float32)),
        grid=(B,),
        in_specs=[
            pl.BlockSpec((T, DP), lambda i: (i, 0)),          # rows b*T .. (b+1)*T
            pl.BlockSpec((1, 1, HP), lambda i: (i, 0, 0)),
            pl.BlockSpec((1, 1, HP), lambda i: (i, 0, 0)),
            pl.BlockSpec((DP, 4 * HP), lambda i: (0, 0)),
            pl.BlockSpec((HP, 4 * HP), lambda i: (0, 0)),
            pl.BlockSpec((1, 4 * HP), lambda i: (0, 0)),
            pl.BlockSpec((HP, D_out), lambda i: (0, 0)),
            pl.BlockSpec((1, D_out), lambda i: (0, 0)),
        ],
        out_specs=(
            pl.BlockSpec((1, T, D_out), lambda i: (i, 0, 0)),
            pl.BlockSpec((1, 1, HP), lambda i: (i, 0, 0)),
            pl.BlockSpec((1, 1, HP), lambda i: (i, 0, 0)),
        ),
        compiler_params=pltpu.CompilerParams(
            dimension_semantics=("parallel",)),               # batch halves -> both TCs on v7x
    )(feat_slab, h0_p, c0_p, w_ih_p, w_hh_p, b_p, w_out_p,
      b_out.reshape(1, -1).astype(jnp.float32))

    hT = hT.reshape(B, HP)[:, :H]
    cT = cT.reshape(B, HP)[:, :H]
    return out, (hT, cT)


# ----------------------------------------------------------------------------
# BaseNetwork.forward
# ----------------------------------------------------------------------------
def base_network_forward(params, batch, prev_context=None):
    frames = batch['visual_observations']                 # (B, T, C, H, W)
    sensory = batch['sensory_observations']               # (B, T, dsens)
    instructions = batch['instructions']                  # (B, T, dinst)
    B, T = frames.shape[:2]
    dframe = params['w_fc'].shape[1]
    D_in = dframe + sensory.shape[-1] + instructions.shape[-1]
    DP = ((D_in + 127) // 128) * 128                      # LSTM input padded to 128 lanes

    # Visual features + feature concatenation fused in one kernel (no XLA concat /
    # extra HBM round trip of the (B,T,D_in) sequence tensor between kernels).
    feat_slab = vis_and_concat_features(frames, sensory, instructions,
                                        params['w_enc'], params['b_enc'],
                                        params['w_fc'], params['b_fc'], DP)  # (B*T, DP)

    Hsz = params['w_hh'].shape[0]
    if prev_context is None:
        h0 = jnp.zeros((B, Hsz), jnp.float32)
        c0 = jnp.zeros((B, Hsz), jnp.float32)
    else:
        h0, c0 = prev_context
        h0 = h0.reshape(B, Hsz)
        c0 = c0.reshape(B, Hsz)

    out_act_t, (hT, cT) = lstm_regressor(
        feat_slab, B, T, h0, c0,
        params['w_ih'], params['w_hh'], params['b_lstm'],
        params['w_out'], params['b_out'])
    # sigmoid on first 10 action dims already fused inside the LSTM kernel.
    context = (hT[None, :, :], cT[None, :, :])            # (num_layers=1, B, H) like torch
    return out_act_t, context


if __name__ == "__main__":
    # Small shapes consistent with the module:
    B, T = 2, 8                  # batch, sequence length
    C, H, W = 4, 16, 16          # frame channels / spatial
    D_ENC = 32                   # vis_encoder.output_shape[0] (stand-in for 2048)
    DFRAME, DSENS, DINST = 16, 8, 8
    HID = 32                     # temporal_network.hidden_size
    D_OUT = 16                   # LSTMRegressor output dim
    D_IN = DFRAME + DSENS + DINST

    key = jax.random.PRNGKey(0)
    ks = jax.random.split(key, 12)
    params = {
        'w_enc':  0.1 * jax.random.normal(ks[0], (C, D_ENC), jnp.float32),
        'b_enc':  0.1 * jax.random.normal(ks[1], (D_ENC,), jnp.float32),
        'w_fc':   0.1 * jax.random.normal(ks[2], (D_ENC, DFRAME), jnp.float32),
        'b_fc':   0.1 * jax.random.normal(ks[3], (DFRAME,), jnp.float32),
        'w_ih':   0.1 * jax.random.normal(ks[4], (D_IN, 4 * HID), jnp.float32),
        'w_hh':   0.1 * jax.random.normal(ks[5], (HID, 4 * HID), jnp.float32),
        'b_lstm': 0.1 * jax.random.normal(ks[6], (4 * HID,), jnp.float32),  # = b_ih + b_hh
        'w_out':  0.1 * jax.random.normal(ks[7], (HID, D_OUT), jnp.float32),
        'b_out':  0.1 * jax.random.normal(ks[8], (D_OUT,), jnp.float32),
    }
    batch = {
        'visual_observations':  jax.random.normal(ks[9],  (B, T, C, H, W), jnp.float32),
        'sensory_observations': jax.random.normal(ks[10], (B, T, DSENS), jnp.float32),
        'instructions':         jax.random.normal(ks[11], (B, T, DINST), jnp.float32),
    }

    out, (h, c) = base_network_forward(params, batch, prev_context=None)
    jax.block_until_ready(out)
    jax.block_until_ready(h)
    jax.block_until_ready(c)
    assert out.shape == (B, T, D_OUT)
    assert h.shape == (1, B, HID) and c.shape == (1, B, HID)
    print("KERNEL_OK")
</pallas_src>

<mosaic_0001>
module attributes {stable_mosaic.version = 11 : i64} {
  func.func @_vis_kernel(%arg0: i32, %arg1: memref<8x1024xbf16, #tpu.memory_space<vmem>>, %arg2: memref<1024x32xbf16, #tpu.memory_space<vmem>>, %arg3: memref<1x32xf32, #tpu.memory_space<vmem>>, %arg4: memref<32x16xbf16, #tpu.memory_space<vmem>>, %arg5: memref<1x16xf32, #tpu.memory_space<vmem>>, %arg6: memref<8x8xf32, #tpu.memory_space<vmem>>, %arg7: memref<8x8xf32, #tpu.memory_space<vmem>>, %arg8: memref<8x128xf32, #tpu.memory_space<vmem>>) attributes {dimension_semantics = [#tpu.dimension_semantics<parallel>], iteration_bounds = array<i64: 2>, scalar_prefetch = 0 : i64, scratch_operands = 0 : i64, tpu.core_type = #tpu.core_type<tc>, window_params = [{transform_indices = @transform_0, window_bounds = array<i64: 8, 1024>}, {pipeline_mode = #tpu.pipeline_mode<synchronous>, transform_indices = @transform_1, window_bounds = array<i64: 1024, 32>}, {pipeline_mode = #tpu.pipeline_mode<synchronous>, transform_indices = @transform_2, window_bounds = array<i64: 1, 32>}, {pipeline_mode = #tpu.pipeline_mode<synchronous>, transform_indices = @transform_3, window_bounds = array<i64: 32, 16>}, {pipeline_mode = #tpu.pipeline_mode<synchronous>, transform_indices = @transform_4, window_bounds = array<i64: 1, 16>}, {transform_indices = @transform_5, window_bounds = array<i64: 8, 8>}, {transform_indices = @transform_6, window_bounds = array<i64: 8, 8>}, {transform_indices = @transform_7, window_bounds = array<i64: 8, 128>}]} {
    %c0 = arith.constant 0 : index
    %c0_0 = arith.constant 0 : index
    %0 = vector.load %arg1[%c0, %c0_0] : memref<8x1024xbf16, #tpu.memory_space<vmem>>, vector<8x1024xbf16>
    %c0_1 = arith.constant 0 : index
    %c0_2 = arith.constant 0 : index
    %1 = vector.load %arg2[%c0_1, %c0_2] : memref<1024x32xbf16, #tpu.memory_space<vmem>>, vector<1024x32xbf16>
    %cst = arith.constant dense<0.000000e+00> : vector<8x32xf32>
    %2 = tpu.matmul %0, %1, %cst {dimension_numbers = #tpu.dot_dimension_numbers<[1], [0], [0], [1], [0, 0, 1, 1], [], []>} : vector<8x1024xbf16>, vector<1024x32xbf16>, vector<8x32xf32> -> vector<8x32xf32>
    %c0_3 = arith.constant 0 : index
    %c0_4 = arith.constant 0 : index
    %3 = vector.load %arg3[%c0_3, %c0_4] : memref<1x32xf32, #tpu.memory_space<vmem>>, vector<1x32xf32>
    %4 = vector.broadcast %3 : vector<1x32xf32> to vector<8x32xf32>
    %5 = arith.addf %2, %4 : vector<8x32xf32>
    %6 = arith.truncf %5 : vector<8x32xf32> to vector<8x32xbf16>
    %c0_5 = arith.constant 0 : index
    %c0_6 = arith.constant 0 : index
    %7 = vector.load %arg4[%c0_5, %c0_6] : memref<32x16xbf16, #tpu.memory_space<vmem>>, vector<32x16xbf16>
    %cst_7 = arith.constant dense<0.000000e+00> : vector<8x16xf32>
    %8 = tpu.matmul %6, %7, %cst_7 {dimension_numbers = #tpu.dot_dimension_numbers<[1], [0], [0], [1], [0, 0, 1, 1], [], []>} : vector<8x32xbf16>, vector<32x16xbf16>, vector<8x16xf32> -> vector<8x16xf32>
    %c0_8 = arith.constant 0 : index
    %c0_9 = arith.constant 0 : index
    %9 = vector.load %arg5[%c0_8, %c0_9] : memref<1x16xf32, #tpu.memory_space<vmem>>, vector<1x16xf32>
    %10 = vector.broadcast %9 : vector<1x16xf32> to vector<8x16xf32>
    %11 = arith.addf %8, %10 : vector<8x16xf32>
    %cst_10 = arith.constant 0.000000e+00 : f32
    %12 = vector.broadcast %cst_10 : f32 to vector<8x16xf32>
    %13 = arith.maximumf %11, %12 : vector<8x16xf32>
    %c0_11 = arith.constant 0 : index
    %c0_12 = arith.constant 0 : index
    %14 = vector.load %arg6[%c0_11, %c0_12] : memref<8x8xf32, #tpu.memory_space<vmem>>, vector<8x8xf32>
    %c0_13 = arith.constant 0 : index
    %c0_14 = arith.constant 0 : index
    %15 = vector.load %arg7[%c0_13, %c0_14] : memref<8x8xf32, #tpu.memory_space<vmem>>, vector<8x8xf32>
    %cst_15 = arith.constant 0.000000e+00 : f32
    %16 = vector.broadcast %cst_15 : f32 to vector<8x96xf32>
    %17 = tpu.concatenate %13, %14, %15, %16 in 1 : vector<8x16xf32>, vector<8x8xf32>, vector<8x8xf32>, vector<8x96xf32> -> vector<8x128xf32>
    %c0_16 = arith.constant 0 : index
    %c0_17 = arith.constant 0 : index
    %18 = vector.load %arg8[%c0_16, %c0_17] : memref<8x128xf32, #tpu.memory_space<vmem>>, vector<8x128xf32>
    tpu.vector_store %arg8[%c0_16, %c0_17], %17 {strides = array<i32>} : memref<8x128xf32, #tpu.memory_space<vmem>>, vector<8x128xf32>,
    return
  }
  func.func @transform_0(%arg0: i32) -> (i32, i32) {
    %c0_i32 = arith.constant 0 : i32
    %c0_i32_0 = arith.constant 0 : i32
    return %arg0, %c0_i32 : i32, i32
  }
  func.func @transform_1(%arg0: i32) -> (i32, i32) {
    %c0_i32 = arith.constant 0 : i32
    %c0_i32_0 = arith.constant 0 : i32
    %c0_i32_1 = arith.constant 0 : i32
    return %c0_i32, %c0_i32_0 : i32, i32
  }
  func.func @transform_2(%arg0: i32) -> (i32, i32) {
    %c0_i32 = arith.constant 0 : i32
    %c0_i32_0 = arith.constant 0 : i32
    %c0_i32_1 = arith.constant 0 : i32
    return %c0_i32, %c0_i32_0 : i32, i32
  }
  func.func @transform_3(%arg0: i32) -> (i32, i32) {
    %c0_i32 = arith.constant 0 : i32
    %c0_i32_0 = arith.constant 0 : i32
    %c0_i32_1 = arith.constant 0 : i32
    return %c0_i32, %c0_i32_0 : i32, i32
  }
  func.func @transform_4(%arg0: i32) -> (i32, i32) {
    %c0_i32 = arith.constant 0 : i32
    %c0_i32_0 = arith.constant 0 : i32
    %c0_i32_1 = arith.constant 0 : i32
    return %c0_i32, %c0_i32_0 : i32, i32
  }
  func.func @transform_5(%arg0: i32) -> (i32, i32) {
    %c0_i32 = arith.constant 0 : i32
    %c0_i32_0 = arith.constant 0 : i32
    return %arg0, %c0_i32 : i32, i32
  }
  func.func @transform_6(%arg0: i32) -> (i32, i32) {
    %c0_i32 = arith.constant 0 : i32
    %c0_i32_0 = arith.constant 0 : i32
    return %arg0, %c0_i32 : i32, i32
  }
  func.func @transform_7(%arg0: i32) -> (i32, i32) {
    %c0_i32 = arith.constant 0 : i32
    %c0_i32_0 = arith.constant 0 : i32
    return %arg0, %c0_i32 : i32, i32
  }
}

</mosaic_0001>

<llo_original>
// kernel: tpu_custom_call.1
$region0: #{tpu_custom_call.1}
  #allocation0 [shape = 'u32[]', space=smem, size = 0x4, offset = 0x4, fixed_abs, tag = 'smem constant byte address 0x4 - core index']
  #allocation1 [shape = 'u32[144,128]{1,0:T(1,128)}', space=vmem, size = 0x12000, scoped, tag = 'internal scratch']
  %s0 = inlined_call_operand.vmem [shape: bf16[16,1024], index: 0, kind: input, shape index: {}]
  %s1 = inlined_call_operand.vmem [shape: bf16[1024,32], index: 1, kind: input, shape index: {}]
  %s2 = inlined_call_operand.vmem [shape: f32[1,32], index: 2, kind: input, shape index: {}]
  %s3 = inlined_call_operand.vmem [shape: bf16[32,16], index: 3, kind: input, shape index: {}]
  %s4 = inlined_call_operand.vmem [shape: f32[1,16], index: 4, kind: input, shape index: {}]
  %s5 = inlined_call_operand.vmem [shape: f32[16,8], index: 5, kind: input, shape index: {}]
  %s6 = inlined_call_operand.vmem [shape: f32[16,8], index: 6, kind: input, shape index: {}]
  %s7 = inlined_call_operand.hbm [shape: f32[16,128], index: 7, kind: output, shape index: {}]
  %s8 = sld [smem:[#allocation0]]
  $region61: #{tpu_custom_call.1} parent=0
    _
  %s10 = ssub.s32 1, %s8
  %s11 = scalar_select 0, %s10, %s8
  $region1: #{tpu_custom_call.1} parent=0
    #allocation2 [shape = 'u8[8192]{0}', space=vmem, size = 0x2000, scoped, tag = 'output window, operand 0']
    #allocation3 [shape = 's32[2]{0}', space=sflag, size = 0x8, scoped, tag = 'scoped memory for tpu_custom_call.1']
    %12 = vsyncpa [#allocation3], 0
    %s13 = scalar_lea.sflag [#allocation3], 1
    %14 = vsyncpa %s13, 0
    loop: start=0, step=1, limit=4
    $region2: #{tpu_custom_call.1} parent=1 // loop_pre_header
      _
    $region3: #{tpu_custom_call.1} parent=1 // loop_header
      %s16 = sphi 0, %s20
      %p17 = scmp.ge.s32.totalorder %s16, 4
      %s26 = sphi 0, %s28
      %s29 = sphi 0, %s26
      %s30 = sphi 0, %s29
      %s46 = sphi 0, %s30
      %s50 = sphi 0, %s50
      %s52 = sphi 0, %s50
      %s53 = sphi 0, %s52
      %s67 = sphi 0, %s53
      %s71 = sphi 0, %s71
      %s73 = sphi 0, %s71
      %s74 = sphi 0, %s73
      %s88 = sphi 0, %s74
      %s92 = sphi 0, %s92
      %s94 = sphi 0, %s92
      %s95 = sphi 0, %s94
      %s109 = sphi 0, %s95
      %s113 = sphi 0, %s113
      %s115 = sphi 0, %s113
      %s116 = sphi 0, %s115
      %s130 = sphi 0, %s116
      %s136 = sphi 0, %s138
      %s139 = sphi 0, %s136
      %s140 = sphi 0, %s139
      %s156 = sphi 0, %s140
      %s162 = sphi 0, %s164
      %s165 = sphi 0, %s162
      %s166 = sphi 0, %s165
      %s182 = sphi 0, %s166
      %s188 = sphi 0, %s190
      %s191 = sphi 0, %s188
      %s192 = sphi 0, %s191
      %s208 = sphi 0, %s192
    $region4: #{tpu_custom_call.1} parent=1 // loop_header_branch
      %19 = sbr.rel (%p17) target = $region8
    $region5: #{tpu_custom_call.1} parent=1 // loop_body
      %s21 = ssub.s32 %s16, 1
      %s22 = ssub.s32 %s16, 2
      %s23 = sadd.s32 %s16, 1
      %s24 = ssub.s32 %s16, %s23
      %p25 = scmp.eq.s32.totalorder %s24, 0
      %s27 = sadd.s32 %s26, 1
      %s28 = scalar_select %p25, %s26, %s27
      %p31 = pneg %p25
      %p32 = scmp.eq.s32.totalorder %s16, 1
      %p33 = por %p31, %p32
      %p34 = scmp.ne.s32.totalorder %s26, %s29
      %p35 = scmp.eq.s32.totalorder %s16, 0
      %p36 = por %p34, %p35
      %p37 = scmp.ne.s32.totalorder %s26, %s29
      %p38 = scmp.eq.s32.totalorder %s21, 1
      %p39 = por %p37, %p38
      %p40 = scmp.ne.s32.totalorder %s29, %s30
      %p41 = scmp.eq.s32.totalorder %s21, 0
      %p42 = por %p40, %p41
      %p43 = scmp.ne.s32.totalorder %s29, %s30
      %p44 = scmp.eq.s32.totalorder %s22, 1
      %p45 = por %p43, %p44
      %p47 = scmp.ne.s32.totalorder %s30, %s46
      %p48 = scmp.eq.s32.totalorder %s22, 0
      %p49 = por %p47, %p48
      %s51 = sadd.s32 %s50, 1
      %p54 = scmp.eq.s32.totalorder %s16, 1
      %p55 = scmp.ne.s32.totalorder %s50, %s52
      %p56 = scmp.eq.s32.totalorder %s16, 0
      %p57 = por %p55, %p56
      %p58 = scmp.ne.s32.totalorder %s50, %s52
      %p59 = scmp.eq.s32.totalorder %s21, 1
      %p60 = por %p58, %p59
      %p61 = scmp.ne.s32.totalorder %s52, %s53
      %p62 = scmp.eq.s32.totalorder %s21, 0
      %p63 = por %p61, %p62
      %p64 = scmp.ne.s32.totalorder %s52, %s53
      %p65 = scmp.eq.s32.totalorder %s22, 1
      %p66 = por %p64, %p65
      %p68 = scmp.ne.s32.totalorder %s53, %s67
      %p69 = scmp.eq.s32.totalorder %s22, 0
      %p70 = por %p68, %p69
      %s72 = sadd.s32 %s71, 1
      %p75 = scmp.eq.s32.totalorder %s16, 1
      %p76 = scmp.ne.s32.totalorder %s71, %s73
      %p77 = scmp.eq.s32.totalorder %s16, 0
      %p78 = por %p76, %p77
      %p79 = scmp.ne.s32.totalorder %s71, %s73
      %p80 = scmp.eq.s32.totalorder %s21, 1
      %p81 = por %p79, %p80
      %p82 = scmp.ne.s32.totalorder %s73, %s74
      %p83 = scmp.eq.s32.totalorder %s21, 0
      %p84 = por %p82, %p83
      %p85 = scmp.ne.s32.totalorder %s73, %s74
      %p86 = scmp.eq.s32.totalorder %s22, 1
      %p87 = por %p85, %p86
      %p89 = scmp.ne.s32.totalorder %s74, %s88
      %p90 = scmp.eq.s32.totalorder %s22, 0
      %p91 = por %p89, %p90
      %s93 = sadd.s32 %s92, 1
      %p96 = scmp.eq.s32.totalorder %s16, 1
      %p97 = scmp.ne.s32.totalorder %s92, %s94
      %p98 = scmp.eq.s32.totalorder %s16, 0
      %p99 = por %p97, %p98
      %p100 = scmp.ne.s32.totalorder %s92, %s94
      %p101 = scmp.eq.s32.totalorder %s21, 1
      %p102 = por %p100, %p101
      %p103 = scmp.ne.s32.totalorder %s94, %s95
      %p104 = scmp.eq.s32.totalorder %s21, 0
      %p105 = por %p103, %p104
      %p106 = scmp.ne.s32.totalorder %s94, %s95
      %p107 = scmp.eq.s32.totalorder %s22, 1
      %p108 = por %p106, %p107
      %p110 = scmp.ne.s32.totalorder %s95, %s109
      %p111 = scmp.eq.s32.totalorder %s22, 0
      %p112 = por %p110, %p111
      %s114 = sadd.s32 %s113, 1
      %p117 = scmp.eq.s32.totalorder %s16, 1
      %p118 = scmp.ne.s32.totalorder %s113, %s115
      %p119 = scmp.eq.s32.totalorder %s16, 0
      %p120 = por %p118, %p119
      %p121 = scmp.ne.s32.totalorder %s113, %s115
      %p122 = scmp.eq.s32.totalorder %s21, 1
      %p123 = por %p121, %p122
      %p124 = scmp.ne.s32.totalorder %s115, %s116
      %p125 = scmp.eq.s32.totalorder %s21, 0
      %p126 = por %p124, %p125
      %p127 = scmp.ne.s32.totalorder %s115, %s116
      %p128 = scmp.eq.s32.totalorder %s22, 1
      %p129 = por %p127, %p128
      %p131 = scmp.ne.s32.totalorder %s116, %s130
      %p132 = scmp.eq.s32.totalorder %s22, 0
      %p133 = por %p131, %p132
      %s134 = ssub.s32 %s16, %s23
      %p135 = scmp.eq.s32.totalorder %s134, 0
      %s137 = sadd.s32 %s136, 1
      %s138 = scalar_select %p135, %s136, %s137
      %p141 = pneg %p135
      %p142 = scmp.eq.s32.totalorder %s16, 1
      %p143 = por %p141, %p142
      %p144 = scmp.ne.s32.totalorder %s136, %s139
      %p145 = scmp.eq.s32.totalorder %s16, 0
      %p146 = por %p144, %p145
      %p147 = scmp.ne.s32.totalorder %s136, %s139
      %p148 = scmp.eq.s32.totalorder %s21, 1
      %p149 = por %p147, %p148
      %p150 = scmp.ne.s32.totalorder %s139, %s140
      %p151 = scmp.eq.s32.totalorder %s21, 0
      %p152 = por %p150, %p151
      %p153 = scmp.ne.s32.totalorder %s139, %s140
      %p154 = scmp.eq.s32.totalorder %s22, 1
      %p155 = por %p153, %p154
      %p157 = scmp.ne.s32.totalorder %s140, %s156
      %p158 = scmp.eq.s32.totalorder %s22, 0
      %p159 = por %p157, %p158
      %s160 = ssub.s32 %s16, %s23
      %p161 = scmp.eq.s32.totalorder %s160, 0
      %s163 = sadd.s32 %s162, 1
      %s164 = scalar_select %p161, %s162, %s163
      %p167 = pneg %p161
      %p168 = scmp.eq.s32.totalorder %s16, 1
      %p169 = por %p167, %p168
      %p170 = scmp.ne.s32.totalorder %s162, %s165
      %p171 = scmp.eq.s32.totalorder %s16, 0
      %p172 = por %p170, %p171
      %p173 = scmp.ne.s32.totalorder %s162, %s165
      %p174 = scmp.eq.s32.totalorder %s21, 1
      %p175 = por %p173, %p174
      %p176 = scmp.ne.s32.totalorder %s165, %s166
      %p177 = scmp.eq.s32.totalorder %s21, 0
      %p178 = por %p176, %p177
      %p179 = scmp.ne.s32.totalorder %s165, %s166
      %p180 = scmp.eq.s32.totalorder %s22, 1
      %p181 = por %p179, %p180
      %p183 = scmp.ne.s32.totalorder %s166, %s182
      %p184 = scmp.eq.s32.totalorder %s22, 0
      %p185 = por %p183, %p184
      %s186 = ssub.s32 %s16, %s23
      %p187 = scmp.eq.s32.totalorder %s186, 0
      %s189 = sadd.s32 %s188, 1
      %s190 = scalar_select %p187, %s188, %s189
      %p193 = pneg %p187
      %p194 = scmp.eq.s32.totalorder %s16, 1
      %p195 = por %p193, %p194
      %p196 = scmp.ne.s32.totalorder %s188, %s191
      %p197 = scmp.eq.s32.totalorder %s16, 0
      %p198 = por %p196, %p197
      %p199 = scmp.ne.s32.totalorder %s188, %s191
      %p200 = scmp.eq.s32.totalorder %s21, 1
      %p201 = por %p199, %p200
      %p202 = scmp.ne.s32.totalorder %s191, %s192
      %p203 = scmp.eq.s32.totalorder %s21, 0
      %p204 = por %p202, %p203
      %p205 = scmp.ne.s32.totalorder %s191, %s192
      %p206 = scmp.eq.s32.totalorder %s22, 1
      %p207 = por %p205, %p206
      %p209 = scmp.ne.s32.totalorder %s192, %s208
      %p210 = scmp.eq.s32.totalorder %s22, 0
      %p211 = por %p209, %p210
      %p212 = scmp.le.s32.totalorder 1, %s16
      %p213 = scmp.lt.s32.totalorder %s16, 3
      %p214 = pnand %p212, %p213
      %p215 = pneg %p214
      // Predicated region
      $region9: #{tpu_custom_call.1} parent=5 // pred_check
        _
      $region10: #{tpu_custom_call.1} parent=5 // pred_check_branch
        %217 = sbr.rel (%p214) target = $region12
      $region11: #{tpu_custom_call.1} parent=5 // pred_region
        %s218 = ssub.s32 %s16, 1
        // Predicated region
        $region13: #{tpu_custom_call.1} parent=11 // pred_check
          %p219 = pneg %p63
        $region14: #{tpu_custom_call.1} parent=11 // pred_check_branch
          %221 = sbr.rel (%p219) target = $region16
        $region15: #{tpu_custom_call.1} parent=11 // pred_region
          _
        $region16: #{tpu_custom_call.1} parent=11 // pred_fallthru
          _
        // Predicated region
        $region17: #{tpu_custom_call.1} parent=11 // pred_check
          %p222 = pneg %p84
        $region18: #{tpu_custom_call.1} parent=11 // pred_check_branch
          %224 = sbr.rel (%p222) target = $region20
        $region19: #{tpu_custom_call.1} parent=11 // pred_region
          _
        $region20: #{tpu_custom_call.1} parent=11 // pred_fallthru
          _
        // Predicated region
        $region21: #{tpu_custom_call.1} parent=11 // pred_check
          %p225 = pneg %p105
        $region22: #{tpu_custom_call.1} parent=11 // pred_check_branch
          %227 = sbr.rel (%p225) target = $region24
        $region23: #{tpu_custom_call.1} parent=11 // pred_region
          _
        $region24: #{tpu_custom_call.1} parent=11 // pred_fallthru
          _
        // Predicated region
        $region25: #{tpu_custom_call.1} parent=11 // pred_check
          %p228 = pneg %p126
        $region26: #{tpu_custom_call.1} parent=11 // pred_check_branch
          %230 = sbr.rel (%p228) target = $region28
        $region27: #{tpu_custom_call.1} parent=11 // pred_region
          _
        $region28: #{tpu_custom_call.1} parent=11 // pred_fallthru
          _
      $region12: #{tpu_custom_call.1} parent=5 // pred_fallthru
        _
      %p231 = scmp.lt.s32.totalorder %s16, 2
      // Predicated region
      $region29: #{tpu_custom_call.1} parent=5 // pred_check
        %p232 = pneg %p231
      $region30: #{tpu_custom_call.1} parent=5 // pred_check_branch
        %234 = sbr.rel (%p232) target = $region32
      $region31: #{tpu_custom_call.1} parent=5 // pred_region
        // Predicated region
        $region33: #{tpu_custom_call.1} parent=31 // pred_check
          %p235 = pneg %p36
        $region34: #{tpu_custom_call.1} parent=31 // pred_check_branch
          %237 = sbr.rel (%p235) target = $region36
        $region35: #{tpu_custom_call.1} parent=31 // pred_region
          %p238 = scmp.lt.s32.totalorder %s16, 1
          %s239 = scalar_select %p238, %s16, 1
          %s240 = smul.addr %s239, 8
          %s241 = smul.addr %s240, 4
          %s242 = scalar_lea.vmem %s0, %s241
        $region36: #{tpu_custom_call.1} parent=31 // pred_fallthru
          _
        // Predicated region
        $region37: #{tpu_custom_call.1} parent=31 // pred_check
          %p243 = pneg %p146
        $region38: #{tpu_custom_call.1} parent=31 // pred_check_branch
          %245 = sbr.rel (%p243) target = $region40
        $region39: #{tpu_custom_call.1} parent=31 // pred_region
          %p246 = scmp.lt.s32.totalorder %s16, 1
          %s247 = scalar_select %p246, %s16, 1
          %s248 = smul.addr %s247, 8
          %s249 = scalar_lea.vmem %s5, %s248
        $region40: #{tpu_custom_call.1} parent=31 // pred_fallthru
          _
        // Predicated region
        $region41: #{tpu_custom_call.1} parent=31 // pred_check
          %p250 = pneg %p172
        $region42: #{tpu_custom_call.1} parent=31 // pred_check_branch
          %252 = sbr.rel (%p250) target = $region44
        $region43: #{tpu_custom_call.1} parent=31 // pred_region
          %p253 = scmp.lt.s32.totalorder %s16, 1
          %s254 = scalar_select %p253, %s16, 1
          %s255 = smul.addr %s254, 8
          %s256 = scalar_lea.vmem %s6, %s255
        $region44: #{tpu_custom_call.1} parent=31 // pred_fallthru
          _
      $region32: #{tpu_custom_call.1} parent=5 // pred_fallthru
        _
      %p257 = scmp.le.s32.totalorder 1, %s16
      %p258 = scmp.lt.s32.totalorder %s16, 3
      %p259 = pnand %p257, %p258
      %p260 = pneg %p259
      // Predicated region
      $region45: #{tpu_custom_call.1} parent=5 // pred_check
        _
      $region46: #{tpu_custom_call.1} parent=5 // pred_check_branch
        %262 = sbr.rel (%p259) target = $region48
      $region47: #{tpu_custom_call.1} parent=5 // pred_region
        %s263 = ssub.s32 %s16, 1
        %p264 = scmp.lt.s32.totalorder %s21, 1
        %s265 = scalar_select %p264, %s21, 1
        %s266 = smul.addr %s265, 8
        %s267 = smul.addr %s266, 4
        %s268 = scalar_lea.vmem %s0, %s267
        %p269 = pneg %p42
        %p270 = pneg %p39
        %p271 = pneg %p63
        %p272 = pneg %p60
        %p273 = pneg %p84
        %p274 = pneg %p81
        %p275 = pneg %p105
        %p276 = pneg %p102
        %p277 = pneg %p126
        %p278 = pneg %p123
        %p279 = scmp.lt.s32.totalorder %s21, 1
        %s280 = scalar_select %p279, %s21, 1
        %s281 = smul.addr %s280, 8
        %s282 = scalar_lea.vmem %s5, %s281
        %p283 = pneg %p152
        %p284 = pneg %p149
        %p285 = scmp.lt.s32.totalorder %s21, 1
        %s286 = scalar_select %p285, %s21, 1
        %s287 = smul.addr %s286, 8
        %s288 = scalar_lea.vmem %s6, %s287
        %p289 = pneg %p178
        %p290 = pneg %p175
        %p291 = pneg %p204
        %p292 = pneg %p201
        %s293 = sand.u32 %s191, 1
        %s294 = scalar_lea.sflag [#allocation3], %s293
        %s295 = sand.u32 %s191, 1
        %s296 = smul.addr %s295, 8
        %s297 = scalar_lea.vmem [#allocation2], %s296
        %p298 = scmp.lt.s32.totalorder %s21, 1
        %s299 = scalar_select %p298, %s21, 1
        %s300 = smul.addr %s299, 8
        %s301 = smul.addr %s300, 4
        %s302 = scalar_lea.vmem %s0, %s301
        %p303 = scmp.lt.s32.totalorder %s21, 1
        %s304 = scalar_select %p303, %s21, 1
        %s305 = smul.addr %s304, 8
        %s306 = scalar_lea.vmem %s5, %s305
        %p307 = scmp.lt.s32.totalorder %s21, 1
        %s308 = scalar_select %p307, %s21, 1
        %s309 = smul.addr %s308, 8
        %s310 = scalar_lea.vmem %s6, %s309
        %v312 = vld [vmem:[%s302] sm:$0xff]
        %v313 = vld [vmem:[%s302 + $0x8] sm:$0xff]
        %v314 = vld [vmem:[%s302 + $0x10] sm:$0xff]
        %v315 = vld [vmem:[%s302 + $0x18] sm:$0xff]
        %v316 = vld [vmem:[%s1] sm:$0xf]
        %v317 = vld [vmem:[%s1 + $0x4] sm:$0xf]
        %v318 = vld [vmem:[%s1 + $0x8] sm:$0xf]
        %v319 = vld [vmem:[%s1 + $0xc] sm:$0xf]
        %v320 = vld [vmem:[%s1 + $0x10] sm:$0xf]
        %v321 = vld [vmem:[%s1 + $0x14] sm:$0xf]
        %v322 = vld [vmem:[%s1 + $0x18] sm:$0xf]
        %v323 = vld [vmem:[%s1 + $0x1c] sm:$0xf]
        %v324 = vld [vmem:[%s1 + $0x20] sm:$0xf]
        %v325 = vld [vmem:[%s1 + $0x24] sm:$0xf]
        %v326 = vld [vmem:[%s1 + $0x28] sm:$0xf]
        %v327 = vld [vmem:[%s1 + $0x2c] sm:$0xf]
        %v328 = vld [vmem:[%s1 + $0x30] sm:$0xf]
        %v329 = vld [vmem:[%s1 + $0x34] sm:$0xf]
        %v330 = vld [vmem:[%s1 + $0x38] sm:$0xf]
        %v331 = vld [vmem:[%s1 + $0x3c] sm:$0xf]
        %v332 = vld [vmem:[%s1 + $0x40] sm:$0xf]
        %v333 = vld [vmem:[%s1 + $0x44] sm:$0xf]
        %v334 = vld [vmem:[%s1 + $0x48] sm:$0xf]
        %v335 = vld [vmem:[%s1 + $0x4c] sm:$0xf]
        %v336 = vld [vmem:[%s1 + $0x50] sm:$0xf]
        %v337 = vld [vmem:[%s1 + $0x54] sm:$0xf]
        %v338 = vld [vmem:[%s1 + $0x58] sm:$0xf]
        %v339 = vld [vmem:[%s1 + $0x5c] sm:$0xf]
        %v340 = vld [vmem:[%s1 + $0x60] sm:$0xf]
        %v341 = vld [vmem:[%s1 + $0x64] sm:$0xf]
        %v342 = vld [vmem:[%s1 + $0x68] sm:$0xf]
        %v343 = vld [vmem:[%s1 + $0x6c] sm:$0xf]
        %v344 = vld [vmem:[%s1 + $0x70] sm:$0xf]
        %v345 = vld [vmem:[%s1 + $0x74] sm:$0xf]
        %v346 = vld [vmem:[%s1 + $0x78] sm:$0xf]
        %v347 = vld [vmem:[%s1 + $0x7c] sm:$0xf]
        %v348 = vld [vmem:[%s1 + $0x80] sm:$0xf]
        %v349 = vld [vmem:[%s1 + $0x84] sm:$0xf]
        %v350 = vld [vmem:[%s1 + $0x88] sm:$0xf]
        %v351 = vld [vmem:[%s1 + $0x8c] sm:$0xf]
        %v352 = vld [vmem:[%s1 + $0x90] sm:$0xf]
        %v353 = vld [vmem:[%s1 + $0x94] sm:$0xf]
        %v354 = vld [vmem:[%s1 + $0x98] sm:$0xf]
        %v355 = vld [vmem:[%s1 + $0x9c] sm:$0xf]
        %v356 = vld [vmem:[%s1 + $0xa0] sm:$0xf]
        %v357 = vld [vmem:[%s1 + $0xa4] sm:$0xf]
        %v358 = vld [vmem:[%s1 + $0xa8] sm:$0xf]
        %v359 = vld [vmem:[%s1 + $0xac] sm:$0xf]
        %v360 = vld [vmem:[%s1 + $0xb0] sm:$0xf]
        %v361 = vld [vmem:[%s1 + $0xb4] sm:$0xf]
        %v362 = vld [vmem:[%s1 + $0xb8] sm:$0xf]
        %v363 = vld [vmem:[%s1 + $0xbc] sm:$0xf]
        %v364 = vld [vmem:[%s1 + $0xc0] sm:$0xf]
        %v365 = vld [vmem:[%s1 + $0xc4] sm:$0xf]
        %v366 = vld [vmem:[%s1 + $0xc8] sm:$0xf]
        %v367 = vld [vmem:[%s1 + $0xcc] sm:$0xf]
        %v368 = vld [vmem:[%s1 + $0xd0] sm:$0xf]
        %v369 = vld [vmem:[%s1 + $0xd4] sm:$0xf]
        %v370 = vld [vmem:[%s1 + $0xd8] sm:$0xf]
        %v371 = vld [vmem:[%s1 + $0xdc] sm:$0xf]
        %v372 = vld [vmem:[%s1 + $0xe0] sm:$0xf]
        %v373 = vld [vmem:[%s1 + $0xe4] sm:$0xf]
        %v374 = vld [vmem:[%s1 + $0xe8] sm:$0xf]
        %v375 = vld [vmem:[%s1 + $0xec] sm:$0xf]
        %v376 = vld [vmem:[%s1 + $0xf0] sm:$0xf]
        %v377 = vld [vmem:[%s1 + $0xf4] sm:$0xf]
        %v378 = vld [vmem:[%s1 + $0xf8] sm:$0xf]
        %v379 = vld [vmem:[%s1 + $0xfc] sm:$0xf]
        %v380 = vld [vmem:[%s1 + $0x100] sm:$0xf]
        %v381 = vld [vmem:[%s1 + $0x104] sm:$0xf]
        %v382 = vld [vmem:[%s1 + $0x108] sm:$0xf]
        %v383 = vld [vmem:[%s1 + $0x10c] sm:$0xf]
        %v384 = vld [vmem:[%s1 + $0x110] sm:$0xf]
        %v385 = vld [vmem:[%s1 + $0x114] sm:$0xf]
        %v386 = vld [vmem:[%s1 + $0x118] sm:$0xf]
        %v387 = vld [vmem:[%s1 + $0x11c] sm:$0xf]
        %v388 = vld [vmem:[%s1 + $0x120] sm:$0xf]
        %v389 = vld [vmem:[%s1 + $0x124] sm:$0xf]
        %v390 = vld [vmem:[%s1 + $0x128] sm:$0xf]
        %v391 = vld [vmem:[%s1 + $0x12c] sm:$0xf]
        %v392 = vld [vmem:[%s1 + $0x130] sm:$0xf]
        %v393 = vld [vmem:[%s1 + $0x134] sm:$0xf]
        %v394 = vld [vmem:[%s1 + $0x138] sm:$0xf]
        %v395 = vld [vmem:[%s1 + $0x13c] sm:$0xf]
        %v396 = vld [vmem:[%s1 + $0x140] sm:$0xf]
        %v397 = vld [vmem:[%s1 + $0x144] sm:$0xf]
        %v398 = vld [vmem:[%s1 + $0x148] sm:$0xf]
        %v399 = vld [vmem:[%s1 + $0x14c] sm:$0xf]
        %v400 = vld [vmem:[%s1 + $0x150] sm:$0xf]
        %v401 = vld [vmem:[%s1 + $0x154] sm:$0xf]
        %v402 = vld [vmem:[%s1 + $0x158] sm:$0xf]
        %v403 = vld [vmem:[%s1 + $0x15c] sm:$0xf]
        %v404 = vld [vmem:[%s1 + $0x160] sm:$0xf]
        %v405 = vld [vmem:[%s1 + $0x164] sm:$0xf]
        %v406 = vld [vmem:[%s1 + $0x168] sm:$0xf]
        %v407 = vld [vmem:[%s1 + $0x16c] sm:$0xf]
        %v408 = vld [vmem:[%s1 + $0x170] sm:$0xf]
        %v409 = vld [vmem:[%s1 + $0x174] sm:$0xf]
        %v410 = vld [vmem:[%s1 + $0x178] sm:$0xf]
        %v411 = vld [vmem:[%s1 + $0x17c] sm:$0xf]
        %v412 = vld [vmem:[%s1 + $0x180] sm:$0xf]
        %v413 = vld [vmem:[%s1 + $0x184] sm:$0xf]
        %v414 = vld [vmem:[%s1 + $0x188] sm:$0xf]
        %v415 = vld [vmem:[%s1 + $0x18c] sm:$0xf]
        %v416 = vld [vmem:[%s1 + $0x190] sm:$0xf]
        %v417 = vld [vmem:[%s1 + $0x194] sm:$0xf]
        %v418 = vld [vmem:[%s1 + $0x198] sm:$0xf]
        %v419 = vld [vmem:[%s1 + $0x19c] sm:$0xf]
        %v420 = vld [vmem:[%s1 + $0x1a0] sm:$0xf]
        %v421 = vld [vmem:[%s1 + $0x1a4] sm:$0xf]
        %v422 = vld [vmem:[%s1 + $0x1a8] sm:$0xf]
        %v423 = vld [vmem:[%s1 + $0x1ac] sm:$0xf]
        %v424 = vld [vmem:[%s1 + $0x1b0] sm:$0xf]
        %v425 = vld [vmem:[%s1 + $0x1b4] sm:$0xf]
        %v426 = vld [vmem:[%s1 + $0x1b8] sm:$0xf]
        %v427 = vld [vmem:[%s1 + $0x1bc] sm:$0xf]
        %v428 = vld [vmem:[%s1 + $0x1c0] sm:$0xf]
        %v429 = vld [vmem:[%s1 + $0x1c4] sm:$0xf]
        %v430 = vld [vmem:[%s1 + $0x1c8] sm:$0xf]
        %v431 = vld [vmem:[%s1 + $0x1cc] sm:$0xf]
        %v432 = vld [vmem:[%s1 + $0x1d0] sm:$0xf]
        %v433 = vld [vmem:[%s1 + $0x1d4] sm:$0xf]
        %v434 = vld [vmem:[%s1 + $0x1d8] sm:$0xf]
        %v435 = vld [vmem:[%s1 + $0x1dc] sm:$0xf]
        %v436 = vld [vmem:[%s1 + $0x1e0] sm:$0xf]
        %v437 = vld [vmem:[%s1 + $0x1e4] sm:$0xf]
        %v438 = vld [vmem:[%s1 + $0x1e8] sm:$0xf]
        %v439 = vld [vmem:[%s1 + $0x1ec] sm:$0xf]
        %v440 = vld [vmem:[%s1 + $0x1f0] sm:$0xf]
        %v441 = vld [vmem:[%s1 + $0x1f4] sm:$0xf]
        %v442 = vld [vmem:[%s1 + $0x1f8] sm:$0xf]
        %v443 = vld [vmem:[%s1 + $0x1fc] sm:$0xf]
        %v444 = vld [vmem:[%s2] sm:$0x1]
        %v446 = vlaneseq
        %v447 = vshrl.u32 %v446, 7
        %v448 = vsub.s32 0, %v447
        %v449 = vrot.slane %v444, %v448
        %v455 = vunpack.c.l.b16 %v312
        %v456 = vunpack.c.h.b16 %v312
        %v457 = vunpack.c.l.b16 %v313
        %v458 = vunpack.c.h.b16 %v313
        %v459 = vunpack.c.l.b16 %v314
        %v460 = vunpack.c.h.b16 %v314
        %v461 = vunpack.c.l.b16 %v315
        %v462 = vunpack.c.h.b16 %v315
        %v463 = vpack.c.b16 %v455, %v455
        %v464 = vpack.c.b16 %v456, %v456
        %v465 = vpack.c.b16 %v457, %v457
        %v466 = vpack.c.b16 %v458, %v458
        %v467 = vpack.c.b16 %v459, %v459
        %v468 = vpack.c.b16 %v460, %v460
        %v469 = vpack.c.b16 %v461, %v461
        %v470 = vpack.c.b16 %v462, %v462
        %v607 = vunpack.c.l.b16 %v316
        %v608 = vunpack.c.l.b16 %v317
        %v609 = vunpack.c.l.b16 %v318
        %v610 = vunpack.c.l.b16 %v319
        %v611 = vunpack.c.l.b16 %v320
        %v612 = vunpack.c.l.b16 %v321
        %v613 = vunpack.c.l.b16 %v322
        %v614 = vunpack.c.l.b16 %v323
        %v615 = vunpack.c.l.b16 %v324
        %v616 = vunpack.c.l.b16 %v325
        %v617 = vunpack.c.l.b16 %v326
        %v618 = vunpack.c.l.b16 %v327
        %v619 = vunpack.c.l.b16 %v328
        %v620 = vunpack.c.l.b16 %v329
        %v621 = vunpack.c.l.b16 %v330
        %v622 = vunpack.c.l.b16 %v331
        %v623 = vunpack.c.l.b16 %v332
        %v624 = vunpack.c.l.b16 %v333
        %v625 = vunpack.c.l.b16 %v334
        %v626 = vunpack.c.l.b16 %v335
        %v627 = vunpack.c.l.b16 %v336
        %v628 = vunpack.c.l.b16 %v337
        %v629 = vunpack.c.l.b16 %v338
        %v630 = vunpack.c.l.b16 %v339
        %v631 = vunpack.c.l.b16 %v340
        %v632 = vunpack.c.l.b16 %v341
        %v633 = vunpack.c.l.b16 %v342
        %v634 = vunpack.c.l.b16 %v343
        %v635 = vunpack.c.l.b16 %v344
        %v636 = vunpack.c.l.b16 %v345
        %v637 = vunpack.c.l.b16 %v346
        %v638 = vunpack.c.l.b16 %v347
        %v639 = vunpack.c.l.b16 %v348
        %v640 = vunpack.c.l.b16 %v349
        %v641 = vunpack.c.l.b16 %v350
        %v642 = vunpack.c.l.b16 %v351
        %v643 = vunpack.c.l.b16 %v352
        %v644 = vunpack.c.l.b16 %v353
        %v645 = vunpack.c.l.b16 %v354
        %v646 = vunpack.c.l.b16 %v355
        %v647 = vunpack.c.l.b16 %v356
        %v648 = vunpack.c.l.b16 %v357
        %v649 = vunpack.c.l.b16 %v358
        %v650 = vunpack.c.l.b16 %v359
        %v651 = vunpack.c.l.b16 %v360
        %v652 = vunpack.c.l.b16 %v361
        %v653 = vunpack.c.l.b16 %v362
        %v654 = vunpack.c.l.b16 %v363
        %v655 = vunpack.c.l.b16 %v364
        %v656 = vunpack.c.l.b16 %v365
        %v657 = vunpack.c.l.b16 %v366
        %v658 = vunpack.c.l.b16 %v367
        %v659 = vunpack.c.l.b16 %v368
        %v660 = vunpack.c.l.b16 %v369
        %v661 = vunpack.c.l.b16 %v370
        %v662 = vunpack.c.l.b16 %v371
        %v663 = vunpack.c.l.b16 %v372
        %v664 = vunpack.c.l.b16 %v373
        %v665 = vunpack.c.l.b16 %v374
        %v666 = vunpack.c.l.b16 %v375
        %v667 = vunpack.c.l.b16 %v376
        %v668 = vunpack.c.l.b16 %v377
        %v669 = vunpack.c.l.b16 %v378
        %v670 = vunpack.c.l.b16 %v379
        %v671 = vunpack.c.l.b16 %v380
        %v672 = vunpack.c.l.b16 %v381
        %v673 = vunpack.c.l.b16 %v382
        %v674 = vunpack.c.l.b16 %v383
        %v675 = vunpack.c.l.b16 %v384
        %v676 = vunpack.c.l.b16 %v385
        %v677 = vunpack.c.l.b16 %v386
        %v678 = vunpack.c.l.b16 %v387
        %v679 = vunpack.c.l.b16 %v388
        %v680 = vunpack.c.l.b16 %v389
        %v681 = vunpack.c.l.b16 %v390
        %v682 = vunpack.c.l.b16 %v391
        %v683 = vunpack.c.l.b16 %v392
        %v684 = vunpack.c.l.b16 %v393
        %v685 = vunpack.c.l.b16 %v394
        %v686 = vunpack.c.l.b16 %v395
        %v687 = vunpack.c.l.b16 %v396
        %v688 = vunpack.c.l.b16 %v397
        %v689 = vunpack.c.l.b16 %v398
        %v690 = vunpack.c.l.b16 %v399
        %v691 = vunpack.c.l.b16 %v400
        %v692 = vunpack.c.l.b16 %v401
        %v693 = vunpack.c.l.b16 %v402
        %v694 = vunpack.c.l.b16 %v403
        %v695 = vunpack.c.l.b16 %v404
        %v696 = vunpack.c.l.b16 %v405
        %v697 = vunpack.c.l.b16 %v406
        %v698 = vunpack.c.l.b16 %v407
        %v699 = vunpack.c.l.b16 %v408
        %v700 = vunpack.c.l.b16 %v409
        %v701 = vunpack.c.l.b16 %v410
        %v702 = vunpack.c.l.b16 %v411
        %v703 = vunpack.c.l.b16 %v412
        %v704 = vunpack.c.l.b16 %v413
        %v705 = vunpack.c.l.b16 %v414
        %v706 = vunpack.c.l.b16 %v415
        %v707 = vunpack.c.l.b16 %v416
        %v708 = vunpack.c.l.b16 %v417
        %v709 = vunpack.c.l.b16 %v418
        %v710 = vunpack.c.l.b16 %v419
        %v711 = vunpack.c.l.b16 %v420
        %v712 = vunpack.c.l.b16 %v421
        %v713 = vunpack.c.l.b16 %v422
        %v714 = vunpack.c.l.b16 %v423
        %v715 = vunpack.c.l.b16 %v424
        %v716 = vunpack.c.l.b16 %v425
        %v717 = vunpack.c.l.b16 %v426
        %v718 = vunpack.c.l.b16 %v427
        %v719 = vunpack.c.l.b16 %v428
        %v720 = vunpack.c.l.b16 %v429
        %v721 = vunpack.c.l.b16 %v430
        %v722 = vunpack.c.l.b16 %v431
        %v723 = vunpack.c.l.b16 %v432
        %v724 = vunpack.c.l.b16 %v433
        %v725 = vunpack.c.l.b16 %v434
        %v726 = vunpack.c.l.b16 %v435
        %v727 = vunpack.c.l.b16 %v436
        %v728 = vunpack.c.l.b16 %v437
        %v729 = vunpack.c.l.b16 %v438
        %v730 = vunpack.c.l.b16 %v439
        %v731 = vunpack.c.l.b16 %v440
        %v732 = vunpack.c.l.b16 %v441
        %v733 = vunpack.c.l.b16 %v442
        %v734 = vunpack.c.l.b16 %v443
        %v735 = vpack.c.b16 %v608, %v607
        %v736 = vpack.c.b16 %v610, %v609
        %v737 = vpack.c.b16 %v612, %v611
        %v738 = vpack.c.b16 %v614, %v613
        %v739 = vpack.c.b16 %v616, %v615
        %v740 = vpack.c.b16 %v618, %v617
        %v741 = vpack.c.b16 %v620, %v619
        %v742 = vpack.c.b16 %v622, %v621
        %v743 = vpack.c.b16 %v624, %v623
        %v744 = vpack.c.b16 %v626, %v625
        %v745 = vpack.c.b16 %v628, %v627
        %v746 = vpack.c.b16 %v630, %v629
        %v747 = vpack.c.b16 %v632, %v631
        %v748 = vpack.c.b16 %v634, %v633
        %v749 = vpack.c.b16 %v636, %v635
        %v750 = vpack.c.b16 %v638, %v637
        %v751 = vpack.c.b16 %v640, %v639
        %v752 = vpack.c.b16 %v642, %v641
        %v753 = vpack.c.b16 %v644, %v643
        %v754 = vpack.c.b16 %v646, %v645
        %v755 = vpack.c.b16 %v648, %v647
        %v756 = vpack.c.b16 %v650, %v649
        %v757 = vpack.c.b16 %v652, %v651
        %v758 = vpack.c.b16 %v654, %v653
        %v759 = vpack.c.b16 %v656, %v655
        %v760 = vpack.c.b16 %v658, %v657
        %v761 = vpack.c.b16 %v660, %v659
        %v762 = vpack.c.b16 %v662, %v661
        %v763 = vpack.c.b16 %v664, %v663
        %v764 = vpack.c.b16 %v666, %v665
        %v765 = vpack.c.b16 %v668, %v667
        %v766 = vpack.c.b16 %v670, %v669
        %v767 = vpack.c.b16 %v672, %v671
        %v768 = vpack.c.b16 %v674, %v673
        %v769 = vpack.c.b16 %v676, %v675
        %v770 = vpack.c.b16 %v678, %v677
        %v771 = vpack.c.b16 %v680, %v679
        %v772 = vpack.c.b16 %v682, %v681
        %v773 = vpack.c.b16 %v684, %v683
        %v774 = vpack.c.b16 %v686, %v685
        %v775 = vpack.c.b16 %v688, %v687
        %v776 = vpack.c.b16 %v690, %v689
        %v777 = vpack.c.b16 %v692, %v691
        %v778 = vpack.c.b16 %v694, %v693
        %v779 = vpack.c.b16 %v696, %v695
        %v780 = vpack.c.b16 %v698, %v697
        %v781 = vpack.c.b16 %v700, %v699
        %v782 = vpack.c.b16 %v702, %v701
        %v783 = vpack.c.b16 %v704, %v703
        %v784 = vpack.c.b16 %v706, %v705
        %v785 = vpack.c.b16 %v708, %v707
        %v786 = vpack.c.b16 %v710, %v709
        %v787 = vpack.c.b16 %v712, %v711
        %v788 = vpack.c.b16 %v714, %v713
        %v789 = vpack.c.b16 %v716, %v715
        %v790 = vpack.c.b16 %v718, %v717
        %v791 = vpack.c.b16 %v720, %v719
        %v792 = vpack.c.b16 %v722, %v721
        %v793 = vpack.c.b16 %v724, %v723
        %v794 = vpack.c.b16 %v726, %v725
        %v795 = vpack.c.b16 %v728, %v727
        %v796 = vpack.c.b16 %v730, %v729
        %v797 = vpack.c.b16 %v732, %v731
        %v798 = vpack.c.b16 %v734, %v733
        %863 = vmatprep.subr.bf16.mxu0 0
        %864 = vmatpush1.bf16.msra.mxu0 %v735
        %865 = vmatprep.subr.bf16.mxu0 0
        %866 = vmatpush1.bf16.msra.mxu0 %v736
        %867 = vmatprep.subr.bf16.mxu0 0
        %868 = vmatpush1.bf16.msra.mxu0 %v737
        %869 = vmatprep.subr.bf16.mxu0 0
        %870 = vmatpush1.bf16.msra.mxu0 %v738
        %871 = vmatprep.subr.bf16.mxu0 0
        %872 = vmatpush1.bf16.msra.mxu0 %v739
        %873 = vmatprep.subr.bf16.mxu0 0
        %874 = vmatpush1.bf16.msra.mxu0 %v740
        %875 = vmatprep.subr.bf16.mxu0 0
        %876 = vmatpush1.bf16.msra.mxu0 %v741
        %877 = vmatprep.subr.bf16.mxu0 0
        %878 = vmatpush1.bf16.msra.mxu0 %v742
        %879 = vmatprep.subr.bf16.mxu0 0
        %880 = vmatpush1.bf16.msra.mxu0 %v743
        %881 = vmatprep.subr.bf16.mxu0 0
        %882 = vmatpush1.bf16.msra.mxu0 %v744
        %883 = vmatprep.subr.bf16.mxu0 0
        %884 = vmatpush1.bf16.msra.mxu0 %v745
        %885 = vmatprep.subr.bf16.mxu0 0
        %886 = vmatpush1.bf16.msra.mxu0 %v746
        %887 = vmatprep.subr.bf16.mxu0 0
        %888 = vmatpush1.bf16.msra.mxu0 %v747
        %889 = vmatprep.subr.bf16.mxu0 0
        %890 = vmatpush1.bf16.msra.mxu0 %v748
        %891 = vmatprep.subr.bf16.mxu0 0
        %892 = vmatpush1.bf16.msra.mxu0 %v749
        %893 = vmatprep.subr.bf16.mxu0 0
        %894 = vmatpush1.bf16.msra.mxu0 %v750
        %895 = vmatprep.mubr.bf16.mxu0 %v464
        %896 = vmatmul.mubr.bf16.gmra.mrb[0].mxu0 %v463
        %v897 = vpop.f32.mrb[0].mxu0
        %v898 = vadd.f32 %v449, %v897
        %v899 = vpop.f32.mrb[0].mxu0
        %v900 = vpop.f32.mrb[0].mxu0
        %v901 = vpop.f32.mrb[0].mxu0
        %902 = vdwg.mxu0
        %903 = vmatprep.subr.bf16.mxu0 0
        %904 = vmatpush1.bf16.msra.mxu0 %v751
        %905 = vmatprep.subr.bf16.mxu0 0
        %906 = vmatpush1.bf16.msra.mxu0 %v752
        %907 = vmatprep.subr.bf16.mxu0 0
        %908 = vmatpush1.bf16.msra.mxu0 %v753
        %909 = vmatprep.subr.bf16.mxu0 0
        %910 = vmatpush1.bf16.msra.mxu0 %v754
        %911 = vmatprep.subr.bf16.mxu0 0
        %912 = vmatpush1.bf16.msra.mxu0 %v755
        %913 = vmatprep.subr.bf16.mxu0 0
        %914 = vmatpush1.bf16.msra.mxu0 %v756
        %915 = vmatprep.subr.bf16.mxu0 0
        %916 = vmatpush1.bf16.msra.mxu0 %v757
        %917 = vmatprep.subr.bf16.mxu0 0
        %918 = vmatpush1.bf16.msra.mxu0 %v758
        %919 = vmatprep.subr.bf16.mxu0 0
        %920 = vmatpush1.bf16.msra.mxu0 %v759
        %921 = vmatprep.subr.bf16.mxu0 0
        %922 = vmatpush1.bf16.msra.mxu0 %v760
        %923 = vmatprep.subr.bf16.mxu0 0
        %924 = vmatpush1.bf16.msra.mxu0 %v761
        %925 = vmatprep.subr.bf16.mxu0 0
        %926 = vmatpush1.bf16.msra.mxu0 %v762
        %927 = vmatprep.subr.bf16.mxu0 0
        %928 = vmatpush1.bf16.msra.mxu0 %v763
        %929 = vmatprep.subr.bf16.mxu0 0
        %930 = vmatpush1.bf16.msra.mxu0 %v764
        %931 = vmatprep.subr.bf16.mxu0 0
        %932 = vmatpush1.bf16.msra.mxu0 %v765
        %933 = vmatprep.subr.bf16.mxu0 0
        %934 = vmatpush1.bf16.msra.mxu0 %v766
        %935 = vmatprep.mubr.bf16.mxu0 %v466
        %936 = vmatmul.mubr.bf16.gmra.mrb[0].mxu0 %v465
        %v937 = vpop.f32.mrb[0].mxu0
        %v938 = vadd.f32 %v898, %v937
        %v939 = vpop.f32.mrb[0].mxu0
        %v940 = vpop.f32.mrb[0].mxu0
        %v941 = vpop.f32.mrb[0].mxu0
        %942 = vdwg.mxu0
        %943 = vmatprep.subr.bf16.mxu0 0
        %944 = vmatpush1.bf16.msra.mxu0 %v767
        %945 = vmatprep.subr.bf16.mxu0 0
        %946 = vmatpush1.bf16.msra.mxu0 %v768
        %947 = vmatprep.subr.bf16.mxu0 0
        %948 = vmatpush1.bf16.msra.mxu0 %v769
        %949 = vmatprep.subr.bf16.mxu0 0
        %950 = vmatpush1.bf16.msra.mxu0 %v770
        %951 = vmatprep.subr.bf16.mxu0 0
        %952 = vmatpush1.bf16.msra.mxu0 %v771
        %953 = vmatprep.subr.bf16.mxu0 0
        %954 = vmatpush1.bf16.msra.mxu0 %v772
        %955 = vmatprep.subr.bf16.mxu0 0
        %956 = vmatpush1.bf16.msra.mxu0 %v773
        %957 = vmatprep.subr.bf16.mxu0 0
        %958 = vmatpush1.bf16.msra.mxu0 %v774
        %959 = vmatprep.subr.bf16.mxu0 0
        %960 = vmatpush1.bf16.msra.mxu0 %v775
        %961 = vmatprep.subr.bf16.mxu0 0
        %962 = vmatpush1.bf16.msra.mxu0 %v776
        %963 = vmatprep.subr.bf16.mxu0 0
        %964 = vmatpush1.bf16.msra.mxu0 %v777
        %965 = vmatprep.subr.bf16.mxu0 0
        %966 = vmatpush1.bf16.msra.mxu0 %v778
        %967 = vmatprep.subr.bf16.mxu0 0
        %968 = vmatpush1.bf16.msra.mxu0 %v779
        %969 = vmatprep.subr.bf16.mxu0 0
        %970 = vmatpush1.bf16.msra.mxu0 %v780
        %971 = vmatprep.subr.bf16.mxu0 0
        %972 = vmatpush1.bf16.msra.mxu0 %v781
        %973 = vmatprep.subr.bf16.mxu0 0
        %974 = vmatpush1.bf16.msra.mxu0 %v782
        %975 = vmatprep.mubr.bf16.mxu0 %v468
        %976 = vmatmul.mubr.bf16.gmra.mrb[0].mxu0 %v467
        %v977 = vpop.f32.mrb[0].mxu0
        %v978 = vadd.f32 %v938, %v977
        %v979 = vpop.f32.mrb[0].mxu0
        %v980 = vpop.f32.mrb[0].mxu0
        %v981 = vpop.f32.mrb[0].mxu0
        %982 = vdwg.mxu0
        %983 = vmatprep.subr.bf16.mxu0 0
        %984 = vmatpush1.bf16.msra.mxu0 %v783
        %985 = vmatprep.subr.bf16.mxu0 0
        %986 = vmatpush1.bf16.msra.mxu0 %v784
        %987 = vmatprep.subr.bf16.mxu0 0
        %988 = vmatpush1.bf16.msra.mxu0 %v785
        %989 = vmatprep.subr.bf16.mxu0 0
        %990 = vmatpush1.bf16.msra.mxu0 %v786
        %991 = vmatprep.subr.bf16.mxu0 0
        %992 = vmatpush1.bf16.msra.mxu0 %v787
        %993 = vmatprep.subr.bf16.mxu0 0
        %994 = vmatpush1.bf16.msra.mxu0 %v788
        %995 = vmatprep.subr.bf16.mxu0 0
        %996 = vmatpush1.bf16.msra.mxu0 %v789
        %997 = vmatprep.subr.bf16.mxu0 0
        %998 = vmatpush1.bf16.msra.mxu0 %v790
        %999 = vmatprep.subr.bf16.mxu0 0
        %1000 = vmatpush1.bf16.msra.mxu0 %v791
        %1001 = vmatprep.subr.bf16.mxu0 0
        %1002 = vmatpush1.bf16.msra.mxu0 %v792
        %1003 = vmatprep.subr.bf16.mxu0 0
        %1004 = vmatpush1.bf16.msra.mxu0 %v793
        %1005 = vmatprep.subr.bf16.mxu0 0
        %1006 = vmatpush1.bf16.msra.mxu0 %v794
        %1007 = vmatprep.subr.bf16.mxu0 0
        %1008 = vmatpush1.bf16.msra.mxu0 %v795
        %1009 = vmatprep.subr.bf16.mxu0 0
        %1010 = vmatpush1.bf16.msra.mxu0 %v796
        %1011 = vmatprep.subr.bf16.mxu0 0
        %1012 = vmatpush1.bf16.msra.mxu0 %v797
        %1013 = vmatprep.subr.bf16.mxu0 0
        %1014 = vmatpush1.bf16.msra.mxu0 %v798
        %1015 = vmatprep.mubr.bf16.mxu0 %v470
        %1016 = vmatmul.mubr.bf16.gmra.mrb[0].mxu0 %v469
        %v1017 = vpop.f32.mrb[0].mxu0
        %v1018 = vadd.f32 %v978, %v1017
        %v1019 = vpop.f32.mrb[0].mxu0
        %v1020 = vpop.f32.mrb[0].mxu0
        %v1021 = vpop.f32.mrb[0].mxu0
        %1022 = vdwg.mxu0
        %v1023 = vpack.c.bf16 %v1018, %v1018
        %v1024 = vld [vmem:[%s3] sm:$0xf]
        %v1025 = vld [vmem:[%s3 + $0x4] sm:$0xf]
        %v1026 = vld [vmem:[%s3 + $0x8] sm:$0xf]
        %v1027 = vld [vmem:[%s3 + $0xc] sm:$0xf]
        %v1028 = vld [vmem:[%s4] sm:$0x1]
        %v1030 = vlaneseq
        %v1031 = vshrl.u32 %v1030, 7
        %v1032 = vsub.s32 0, %v1031
        %v1033 = vrot.slane %v1028, %v1032
        %v1039 = vunpack.c.l.b16 %v1024
        %v1040 = vunpack.c.l.b16 %v1025
        %v1041 = vunpack.c.l.b16 %v1026
        %v1042 = vunpack.c.l.b16 %v1027
        %v1043 = vpack.c.b16 %v1040, %v1039
        %v1044 = vpack.c.b16 %v1042, %v1041
        %vm1047 = vcmask 261120
        %v1049 = vsel %vm1047, %v1023, 0
        %1051 = vmatprep.subr.bf16.mxu0 0
        %1052 = vmatpush1.bf16.msra.mxu0 %v1043
        %1053 = vmatprep.subr.bf16.mxu0 0
        %1054 = vmatpush1.bf16.msra.mxu0 %v1044
        %1055 = vmatprep.subr.bf16.mxu0 0
        %1056 = vmatpush1.bf16.msra.mxu0 0
        %1057 = vmatprep.subr.bf16.mxu0 0
        %1058 = vmatpush1.bf16.msra.mxu0 0
        %1059 = vmatprep.subr.bf16.mxu0 0
        %1060 = vmatpush1.bf16.msra.mxu0 0
        %1061 = vmatprep.subr.bf16.mxu0 0
        %1062 = vmatpush1.bf16.msra.mxu0 0
        %1063 = vmatprep.subr.bf16.mxu0 0
        %1064 = vmatpush1.bf16.msra.mxu0 0
        %1065 = vmatprep.subr.bf16.mxu0 0
        %1066 = vmatpush1.bf16.msra.mxu0 0
        %1067 = vmatprep.subr.bf16.mxu0 0
        %1068 = vmatpush1.bf16.msra.mxu0 0
        %1069 = vmatprep.subr.bf16.mxu0 0
        %1070 = vmatpush1.bf16.msra.mxu0 0
        %1071 = vmatprep.subr.bf16.mxu0 0
        %1072 = vmatpush1.bf16.msra.mxu0 0
        %1073 = vmatprep.subr.bf16.mxu0 0
        %1074 = vmatpush1.bf16.msra.mxu0 0
        %1075 = vmatprep.subr.bf16.mxu0 0
        %1076 = vmatpush1.bf16.msra.mxu0 0
        %1077 = vmatprep.subr.bf16.mxu0 0
        %1078 = vmatpush1.bf16.msra.mxu0 0
        %1079 = vmatprep.subr.bf16.mxu0 0
        %1080 = vmatpush1.bf16.msra.mxu0 0
        %1081 = vmatprep.subr.bf16.mxu0 0
        %1082 = vmatpush1.bf16.msra.mxu0 0
        %1083 = vmatprep.mubr.bf16.mxu0 0
        %1084 = vmatmul.mubr.bf16.gmra.mrb[0].mxu0 %v1049
        %v1085 = vpop.f32.mrb[0].mxu0
        %v1086 = vadd.f32 %v1033, %v1085
        %v1087 = vpop.f32.mrb[0].mxu0
        %v1088 = vpop.f32.mrb[0].mxu0
        %v1089 = vpop.f32.mrb[0].mxu0
        %1090 = vdwg.mxu0
        %v1091 = vmax.f32 %v1086, 0.0
        %v1092 = vld [vmem:[%s306] sm:$0xff]
        %v1093 = vld [vmem:[%s310] sm:$0xff]
        %1095 = vrot.lane.b32.xlu0 %v1092, 16
        %v1096 = vpop.permute.xlu0 %1095
        %1099 = vrot.lane.b32.xlu0 %v1093, 24
        %v1100 = vpop.permute.xlu0 %1099
        %vm1102 = vcmask 130048
        %v1103 = vsel %vm1102, %v1091, %v1096
        %vm1104 = vcmask 195584
        %v1105 = vsel %vm1104, %v1103, %v1100
        %v1106 = vsel %vm1047, %v1105, 0.0
        %1107 = vst [vmem:[%s297] sm:$0xff] %v1106
        %s1108 = sand.u32 %s191, 1
        %s1109 = scalar_lea.sflag [#allocation3], %s1108
        %s1110 = sand.u32 %s191, 1
        %s1111 = smul.addr %s1110, 8
        %s1112 = scalar_lea.vmem [#allocation2], %s1111
        // Predicated region
        $region49: #{tpu_custom_call.1} parent=47 // pred_check
          %p1113 = pneg %p201
        $region50: #{tpu_custom_call.1} parent=47 // pred_check_branch
          %1115 = sbr.rel (%p1113) target = $region52
        $region51: #{tpu_custom_call.1} parent=47 // pred_region
          %s1117 = ssub.s32 128, 128
          %1118 = vsyncadd %s1109, %s1117
          %s1119 = smul.addr %s21, 128
          %s1120 = scalar_lea.hbm %s7, %s1119
          %s1122 = sshll.u32 %s1112, 4
          %s1123 = int_to_ptr.vmem [resolvable:$true] %s1122
          %1125 = dma.vmem_to_hbm [thread:$0]  %s1123, 128, %s1120, %s1109
        $region52: #{tpu_custom_call.1} parent=47 // pred_fallthru
          _
      $region48: #{tpu_custom_call.1} parent=5 // pred_fallthru
        _
      %p1126 = scmp.le.s32.totalorder 2, %s16
      // Predicated region
      $region53: #{tpu_custom_call.1} parent=5 // pred_check
        %p1127 = pneg %p1126
      $region54: #{tpu_custom_call.1} parent=5 // pred_check_branch
        %1129 = sbr.rel (%p1127) target = $region56
      $region55: #{tpu_custom_call.1} parent=5 // pred_region
        %s1130 = ssub.s32 %s16, 2
        // Predicated region
        $region57: #{tpu_custom_call.1} parent=55 // pred_check
          %p1131 = pneg %p207
        $region58: #{tpu_custom_call.1} parent=55 // pred_check_branch
          %1133 = sbr.rel (%p1131) target = $region60
        $region59: #{tpu_custom_call.1} parent=55 // pred_region
          %s1134 = sand.u32 %s192, 1
          %s1135 = scalar_lea.sflag [#allocation3], %s1134
          %s1136 = sand.u32 %s192, 1
          %s1137 = smul.addr %s1136, 8
          %s1138 = scalar_lea.vmem [#allocation2], %s1137
          %1139 = dma.done %s1135, 128
        $region60: #{tpu_custom_call.1} parent=55 // pred_fallthru
          _
      $region56: #{tpu_custom_call.1} parent=5 // pred_fallthru
        _
    $region6: #{tpu_custom_call.1} parent=1 // loop_footer
      %s20 = sadd.s32 1, %s16
    $region7: #{tpu_custom_call.1} parent=1 // loop_footer_branch
      %15 = sbr.rel target = $region3
    $region8: #{tpu_custom_call.1} parent=1 // loop_exit
      _
    %1140 = vsyncpa [#allocation3], 1
    %s1141 = scalar_lea.sflag [#allocation3], 1
    %1142 = vsyncpa %s1141, 1

</llo_original>
